<compile_context>
chip_gen: v6e
topology: v6e:2x2x1
jax: 0.10.0
libtpu: 0.0.40
codegen_flags: <defaults>
</compile_context>

<pallas_src>
import functools
import numpy as np
import jax
import jax.numpy as jnp
from jax.experimental import pallas as pl
from jax.experimental.pallas import tpu as pltpu

VMEM_LIMIT = 48 * 1024 * 1024   # < 64 MiB physical VMEM per TC on v7x


# ---------------------------------------------------------------------------
# NATTEN neighborhood-window helpers (exact port, general dilation >= 1).
# Pure python, trace-time only (static shapes / indices).
# ---------------------------------------------------------------------------
def _window_start(index, length, kernel_size, dilation):
    nh = kernel_size // 2
    if dilation <= 1:
        ni = max(index - nh, 0)
        if index + nh >= length:
            ni += length - index - nh - 1
        return ni
    ni = index - nh * dilation
    if ni < 0:
        return index % dilation
    if index + nh * dilation >= length:
        imodd = index % dilation
        a = length // dilation
        b = length - a * dilation
        if imodd < b:
            return length - b + imodd - 2 * nh * dilation
        return a * dilation - dilation + imodd - 2 * nh * dilation
    return ni


def _pb_start(index, length, kernel_size, dilation):
    nh = kernel_size // 2
    if dilation <= 1:
        pi = nh
        if index < nh:
            pi += nh - index
        if index + nh >= length:
            pi += length - index - 1 - nh
        return pi
    if index - nh * dilation < 0:
        return kernel_size - 1 - (index // dilation)
    if index + nh * dilation >= length:
        return (length - index - 1) // dilation
    return nh


def _segments(idx):
    """Decompose a static index vector into maximal runs that are either
    consecutive (+1 stride, 'c') or constant ('b').  Destination order ==
    list order; sum(length) == len(idx)."""
    idx = [int(v) for v in idx]
    segs, i, n = [], 0, len(idx)
    while i < n:
        j = i + 1
        if j < n and idx[j] == idx[i] + 1:
            while j < n and idx[j] == idx[j - 1] + 1:
                j += 1
            segs.append((idx[i], j - i, 'c'))
        elif j < n and idx[j] == idx[i]:
            while j < n and idx[j] == idx[i]:
                j += 1
            segs.append((idx[i], j - i, 'b'))
        else:
            segs.append((idx[i], 1, 'c'))
        i = j
    return segs


# ---------------------------------------------------------------------------
# Linear (qkv / proj) Pallas kernel: y = x @ w + b, bf16 MXU, f32 accumulation.
# ---------------------------------------------------------------------------
def _linear_kernel(x_ref, w_ref, b_ref, o_ref):
    x = x_ref[...].astype(jnp.bfloat16)          # bf16 -> full-rate MXU arrays
    w = w_ref[...].astype(jnp.bfloat16)
    acc = jnp.dot(x, w, preferred_element_type=jnp.float32)
    o_ref[...] = (acc + b_ref[...].astype(jnp.float32)).astype(o_ref.dtype)


def pallas_linear(x, w, b, *, tm=512):
    """x: (M, Cin), w: (Cin, Cout), b: (Cout,) -> (M, Cout)."""
    M, Cin = x.shape
    Cout = w.shape[1]
    if M <= tm:
        tm = max(8, ((M + 7) // 8) * 8)
    # M tail handled by Pallas partial blocks (no host-side jnp.pad).
    grid = (pl.cdiv(M, tm),)
    return pl.pallas_call(
        _linear_kernel,
        out_shape=jax.ShapeDtypeStruct((M, Cout), x.dtype),
        grid=grid,
        in_specs=[
            pl.BlockSpec((tm, Cin), lambda i: (i, 0)),
            pl.BlockSpec((Cin, Cout), lambda i: (0, 0)),
            pl.BlockSpec((1, Cout), lambda i: (0, 0)),
        ],
        out_specs=pl.BlockSpec((tm, Cout), lambda i: (i, 0)),
        compiler_params=pltpu.CompilerParams(
            dimension_semantics=("parallel",),
            vmem_limit_bytes=VMEM_LIMIT),
    )(x, w, b.reshape(1, Cout))


# ---------------------------------------------------------------------------
# Neighborhood attention kernel: one (batch, row-tile) per grid step.
# ---------------------------------------------------------------------------
def _na_kernel(qkv_hbm, bias_ref, o_ref, q_sl, k_sl, v_sl, rs_ref, sem, *,
               scale, num_heads, head_dim, K, dilation, H, W, C, Th, Hs, pad,
               R, segs_first, segs_last, col_segs):
    f32 = jnp.float32
    N = Th * W
    nh = K // 2

    b = pl.program_id(0)
    r = pl.program_id(1)
    r0 = r * Th
    # Slab of rows [a, a+Hs) always covers every NATTEN neighbor row of the
    # query rows [r0, r0+Th) (halo = (K-1)*dilation each side, clamped).
    a = jnp.minimum(jnp.maximum(r0 - pad, 0), H - Hs)

    # ---- manual DMA of q rows + k/v halo slabs (overlapping row windows
    #      are not expressible with Blocked index maps) -----------------------
    copies = [
        pltpu.make_async_copy(
            qkv_hbm.at[b, pl.ds(r0, Th), pl.ds(0, W), pl.ds(0, C)],
            q_sl, sem.at[0]),
        pltpu.make_async_copy(
            qkv_hbm.at[b, pl.ds(a, Hs), pl.ds(0, W), pl.ds(C, C)],
            k_sl, sem.at[1]),
        pltpu.make_async_copy(
            qkv_hbm.at[b, pl.ds(a, Hs), pl.ds(0, W), pl.ds(2 * C, C)],
            v_sl, sem.at[2]),
    ]
    for cp in copies:
        cp.start()
    for cp in copies:
        cp.wait()
    # TODO(synk): double-buffer these slab copies across grid steps (P4) so the
    #             DMA overlaps compute; compute dominates for K >= 3.

    # Block-diagonal 0/1 head reduce / expand matrices (MXU does the per-head
    # head_dim reduction and the prob->channel expansion; no XLU reductions).
    ch = jax.lax.broadcasted_iota(jnp.int32, (C, num_heads), 0) // head_dim
    hh = jax.lax.broadcasted_iota(jnp.int32, (C, num_heads), 1)
    bd_r = (ch == hh).astype(f32)                                  # (C, heads)
    hh2 = jax.lax.broadcasted_iota(jnp.int32, (num_heads, C), 0)
    ch2 = jax.lax.broadcasted_iota(jnp.int32, (num_heads, C), 1) // head_dim
    bd_e = (hh2 == ch2).astype(f32)                                # (heads, C)

    q = q_sl[...].reshape(N, C).astype(f32) * scale                # (N, C)

    def build_row_shift(src_ref, ki):
        """rs_ref[t] = src_ref[nbr_row(r0 + t, ki) - a] for t in [0, Th)."""
        def write(segs):
            off = 0
            for (s0, length, kind) in segs:
                if kind == 'c':
                    rs_ref[pl.ds(off, length)] = src_ref[pl.ds(s0, length)]
                else:  # boundary rows: broadcast one source row
                    rs_ref[pl.ds(off, length)] = jnp.broadcast_to(
                        src_ref[pl.ds(s0, 1)], (length, W, C))
                off += length

        if R == 1:
            write(segs_first[ki])
            return
        if R > 2:
            @pl.when((r > 0) & (r < R - 1))
            def _():
                # interior tiles: pure shift -> single dynamic row slice
                rs_ref[...] = src_ref[pl.ds(r0 - a + (ki - nh) * dilation, Th)]

        @pl.when(r == 0)
        def _():
            write(segs_first[ki])

        @pl.when(r == R - 1)
        def _():
            write(segs_last[ki])

    def col_shift(x, kj):
        parts = []
        for (s0, length, kind) in col_segs[kj]:
            if kind == 'c':
                parts.append(x[:, s0:s0 + length, :])
            else:
                parts.append(jnp.broadcast_to(x[:, s0:s0 + 1, :],
                                              (Th, length, C)))
        y = parts[0] if len(parts) == 1 else jnp.concatenate(parts, axis=1)
        return y.reshape(N, C)

    # ---- pass 1: per-offset logits, kept only as compact (N, heads) tensors -
    logits = []
    for ki in range(K):
        build_row_shift(k_sl, ki)
        rk = rs_ref[...].astype(f32)                               # (Th, W, C)
        for kj in range(K):
            ck = col_shift(rk, kj)                                 # (N, C)
            s = jnp.dot(q * ck, bd_r, preferred_element_type=f32)  # MXU
            s = s + bias_ref[ki * K + kj].reshape(N, num_heads)
            logits.append(s)

    # ---- stable softmax stats over the K*K neighborhood ---------------------
    m = logits[0]
    for s in logits[1:]:
        m = jnp.maximum(m, s)
    den = None
    for s in logits:
        e = jnp.exp(s - m)
        den = e if den is None else den + e
    # approx reciprocal runs on the EUP slot; ~fine for this use (not bit-exact)
    inv = pl.reciprocal(den, approx=True)                          # (N, heads)

    # ---- pass 2: probability-weighted neighbor values -----------------------
    acc = jnp.zeros((N, C), f32)
    kk = 0
    for ki in range(K):
        build_row_shift(v_sl, ki)
        rv = rs_ref[...].astype(f32)
        for kj in range(K):
            cv = col_shift(rv, kj)                                 # (N, C)
            p = jnp.exp(logits[kk] - m) * inv                      # (N, heads)
            acc = acc + jnp.dot(p, bd_e, preferred_element_type=f32) * cv
            kk += 1

    o_ref[0] = acc.reshape(Th, W, C).astype(o_ref.dtype)


def _choose_row_tile(H, W, C, min_rows, requested=None):
    def valid(t):
        return (t >= 1 and H % t == 0 and (t % 8 == 0 or t == H)
                and (H // t <= 2 or t >= min_rows))
    if requested is not None and valid(requested):
        return requested
    target = max(8, (2 * 1024 * 1024) // max(1, W * C * 4))
    if H <= target:
        return H
    cands = [t for t in range(8, H, 8) if valid(t) and t <= target]
    return max(cands) if cands else H


def _build_bias_maps(rpb, H, W, num_heads, K, dilation):
    """Host-side precompute: (K*K, H, W, heads) f32 per-offset bias maps."""
    if rpb is None:
        return jnp.zeros((K * K, H, W, num_heads), jnp.float32)
    pb_i = np.array([_pb_start(i, H, K, dilation) for i in range(H)])
    pb_j = np.array([_pb_start(j, W, K, dilation) for j in range(W)])
    pi = pb_i[:, None, None, None] + np.arange(K)[None, None, :, None]
    pj = pb_j[None, :, None, None] + np.arange(K)[None, None, None, :]
    maps = rpb[:, pi, pj]                                   # (heads, H, W, K, K)
    maps = jnp.transpose(maps, (3, 4, 1, 2, 0))             # (K, K, H, W, heads)
    return maps.reshape(K * K, H, W, num_heads).astype(jnp.float32)


def pallas_neighborhood_attention(qkv, bias_maps, *, num_heads, kernel_size,
                                  dilation, scale, row_tile=None):
    """qkv: (B, H, W, 3C) straight from the qkv linear (no host transposes);
    bias_maps: (K*K, H, W, heads).  Returns (B, H, W, C)."""
    B, H, W, C3 = qkv.shape
    C = C3 // 3
    head_dim = C // num_heads
    K = kernel_size
    d = dilation
    nh = K // 2
    pad = (K - 1) * d

    Th = _choose_row_tile(H, W, C, min_rows=nh * d, requested=row_tile)
    R = H // Th
    Hs = min(Th + 2 * pad, H)

    ws_r = [_window_start(i, H, K, d) for i in range(H)]
    ws_c = [_window_start(j, W, K, d) for j in range(W)]
    a_first = 0
    a_last = min(max(H - Th - pad, 0), H - Hs)

    segs_first = tuple(tuple(_segments([ws_r[t] + ki * d - a_first
                                        for t in range(Th)]))
                       for ki in range(K))
    segs_last = tuple(tuple(_segments([ws_r[H - Th + t] + ki * d - a_last
                                       for t in range(Th)]))
                      for ki in range(K))
    col_segs = tuple(tuple(_segments([ws_c[j] + kj * d for j in range(W)]))
                     for kj in range(K))

    # Trace-time sanity: segments stay inside the halo slab / row width.
    for group, limit, total in ((segs_first, Hs, Th), (segs_last, Hs, Th),
                                (col_segs, W, W)):
        for segs in group:
            assert sum(L for _, L, _ in segs) == total
            for s0, L, kind in segs:
                top = s0 + (L if kind == 'c' else 1)
                assert 0 <= s0 and top <= limit, (s0, L, kind, limit)

    kernel = functools.partial(
        _na_kernel, scale=float(scale), num_heads=num_heads, head_dim=head_dim,
        K=K, dilation=d, H=H, W=W, C=C, Th=Th, Hs=Hs, pad=pad, R=R,
        segs_first=segs_first, segs_last=segs_last, col_segs=col_segs)

    return pl.pallas_call(
        kernel,
        out_shape=jax.ShapeDtypeStruct((B, H, W, C), qkv.dtype),
        grid=(B, R),
        in_specs=[
            pl.BlockSpec(memory_space=pl.ANY),                  # raw qkv in HBM
            pl.BlockSpec((K * K, Th, W, num_heads),
                         lambda b, r: (0, r, 0, 0)),            # bias maps
        ],
        out_specs=pl.BlockSpec((1, Th, W, C), lambda b, r: (b, r, 0, 0)),
        scratch_shapes=[
            pltpu.VMEM((Th, W, C), qkv.dtype),      # q rows
            pltpu.VMEM((Hs, W, C), qkv.dtype),      # k halo slab
            pltpu.VMEM((Hs, W, C), qkv.dtype),      # v halo slab
            pltpu.VMEM((Th, W, C), qkv.dtype),      # row-shifted k/v scratch
            pltpu.SemaphoreType.DMA((3,)),
        ],
        compiler_params=pltpu.CompilerParams(
            dimension_semantics=("parallel", "parallel"),
            vmem_limit_bytes=VMEM_LIMIT),
    )(qkv, bias_maps)


# ---------------------------------------------------------------------------
# Full forward (glue in plain JAX, hot paths in Pallas)
# ---------------------------------------------------------------------------
def wintome_na2d_forward(x, params, *, num_heads, kernel_size, dilation=1,
                         use_pallas=True, row_tile=None):
    B, Hp, Wp, C = x.shape
    head_dim = C // num_heads
    scale = params.get("qk_scale") or head_dim ** (-0.5)
    window = kernel_size * dilation

    H, W = Hp, Wp
    pad_r = pad_b = 0
    if H < window or W < window:
        pad_r = max(0, window - W)
        pad_b = max(0, window - H)
        x = jnp.pad(x, ((0, 0), (0, pad_b), (0, pad_r), (0, 0)))
        _, H, W, _ = x.shape

    xf = x.reshape(B * H * W, C)
    if use_pallas:
        qkv_flat = pallas_linear(xf, params["w_qkv"], params["b_qkv"])
    else:
        qkv_flat = xf @ params["w_qkv"] + params["b_qkv"]

    if use_pallas:
        qkv = qkv_flat.reshape(B, H, W, 3 * C)     # no transpose needed
        bias_maps = _build_bias_maps(params.get("rpb"), H, W, num_heads,
                                     kernel_size, dilation)
        out = pallas_neighborhood_attention(
            qkv, bias_maps, num_heads=num_heads, kernel_size=kernel_size,
            dilation=dilation, scale=scale, row_tile=row_tile)
    else:
        # Pure-JAX reference path (explicit gather formulation).
        K = kernel_size
        qkv = qkv_flat.reshape(B, H, W, 3, num_heads, head_dim)
        qkv = jnp.transpose(qkv, (3, 0, 4, 1, 2, 5))
        q, k, v = qkv[0] * scale, qkv[1], qkv[2]
        nbr_i = np.array([[_window_start(i, H, K, dilation) + ki * dilation
                           for ki in range(K)] for i in range(H)])
        nbr_j = np.array([[_window_start(j, W, K, dilation) + kj * dilation
                           for kj in range(K)] for j in range(W)])
        pb_i = np.array([_pb_start(i, H, K, dilation) for i in range(H)])
        pb_j = np.array([_pb_start(j, W, K, dilation) for j in range(W)])
        ii = nbr_i[:, None, :, None]
        jj = nbr_j[None, :, None, :]
        k_nbr = k[:, :, ii, jj, :]               # (B, heads, H, W, K, K, d)
        v_nbr = v[:, :, ii, jj, :]
        attn = jnp.einsum('bhijd,bhijkld->bhijkl', q, k_nbr)
        if params.get("rpb") is not None:
            pi = pb_i[:, None, None, None] + np.arange(K)[None, None, :, None]
            pj = pb_j[None, :, None, None] + np.arange(K)[None, None, None, :]
            attn = attn + params["rpb"][:, pi, pj][None]
        attn = attn.reshape(B, num_heads, H, W, K * K)
        attn = jax.nn.softmax(attn, axis=-1).reshape(B, num_heads, H, W, K, K)
        out = jnp.einsum('bhijkl,bhijkld->bhijd', attn, v_nbr)
        out = jnp.transpose(out, (0, 2, 3, 1, 4)).reshape(B, H, W, C)
    # attn_drop / proj_drop are p=0.0 (identity) — not implemented.

    if pad_r or pad_b:
        out = out[:, :Hp, :Wp, :]

    of = out.reshape(B * Hp * Wp, C)
    if use_pallas:
        y = pallas_linear(of, params["w_proj"], params["b_proj"])
    else:
        y = of @ params["w_proj"] + params["b_proj"]
    return y.reshape(B, Hp, Wp, C)


# ---------------------------------------------------------------------------
if __name__ == "__main__":
    def make_params(key, C, num_heads, K):
        k2, k3, k4, k5, k6 = jax.random.split(key, 5)
        return {
            "w_qkv": jax.random.normal(k2, (C, 3 * C), jnp.float32) * 0.1,
            "b_qkv": jax.random.normal(k3, (3 * C,), jnp.float32) * 0.1,
            "rpb": jax.random.normal(
                k4, (num_heads, 2 * K - 1, 2 * K - 1), jnp.float32) * 0.02,
            "w_proj": jax.random.normal(k5, (C, C), jnp.float32) * 0.1,
            "b_proj": jax.random.normal(k6, (C,), jnp.float32) * 0.1,
            "qk_scale": None,
        }

    key = jax.random.PRNGKey(0)
    configs = [
        # (B, H, W, C, heads, K, dilation, row_tile)
        (2, 16, 16, 32, 4, 3, 1, 8),    # two row tiles (first/last branches)
        (1, 24, 24, 32, 4, 3, 1, 8),    # three row tiles (interior branch)
        (1, 16, 16, 32, 4, 3, 2, 8),    # dilation > 1
    ]
    for (B, H, W, C, heads, K, d, th) in configs:
        kx, kp, key = jax.random.split(key, 3)
        x = jax.random.normal(kx, (B, H, W, C), jnp.float32)
        params = make_params(kp, C, heads, K)
        out = wintome_na2d_forward(
            x, params, num_heads=heads, kernel_size=K, dilation=d,
            use_pallas=True, row_tile=th)
        out = jax.block_until_ready(out)
        assert out.shape == (B, H, W, C)
        ref = wintome_na2d_forward(
            x, params, num_heads=heads, kernel_size=K, dilation=d,
            use_pallas=False)
        np.testing.assert_allclose(np.asarray(out), np.asarray(ref),
                                   rtol=2e-2, atol=2e-2)

    print("KERNEL_OK")
</pallas_src>

<mosaic_0001>
module attributes {stable_mosaic.version = 11 : i64} {
  func.func @_linear_kernel(%arg0: i32, %arg1: memref<512x32xf32, #tpu.memory_space<vmem>>, %arg2: memref<32x96xf32, #tpu.memory_space<vmem>>, %arg3: memref<1x96xf32, #tpu.memory_space<vmem>>, %arg4: memref<512x96xf32, #tpu.memory_space<vmem>>) attributes {dimension_semantics = [#tpu.dimension_semantics<parallel>], iteration_bounds = array<i64: 1>, scalar_prefetch = 0 : i64, scratch_operands = 0 : i64, tpu.core_type = #tpu.core_type<tc>, window_params = [{transform_indices = @transform_0, window_bounds = array<i64: 512, 32>}, {pipeline_mode = #tpu.pipeline_mode<synchronous>, transform_indices = @transform_1, window_bounds = array<i64: 32, 96>}, {pipeline_mode = #tpu.pipeline_mode<synchronous>, transform_indices = @transform_2, window_bounds = array<i64: 1, 96>}, {transform_indices = @transform_3, window_bounds = array<i64: 512, 96>}]} {
    %c0 = arith.constant 0 : index
    %c0_0 = arith.constant 0 : index
    %0 = vector.load %arg1[%c0, %c0_0] : memref<512x32xf32, #tpu.memory_space<vmem>>, vector<512x32xf32>
    %1 = arith.truncf %0 : vector<512x32xf32> to vector<512x32xbf16>
    %c0_1 = arith.constant 0 : index
    %c0_2 = arith.constant 0 : index
    %2 = vector.load %arg2[%c0_1, %c0_2] : memref<32x96xf32, #tpu.memory_space<vmem>>, vector<32x96xf32>
    %3 = arith.truncf %2 : vector<32x96xf32> to vector<32x96xbf16>
    %cst = arith.constant dense<0.000000e+00> : vector<512x96xf32>
    %4 = tpu.matmul %1, %3, %cst {dimension_numbers = #tpu.dot_dimension_numbers<[1], [0], [0], [1], [0, 0, 1, 1], [], []>} : vector<512x32xbf16>, vector<32x96xbf16>, vector<512x96xf32> -> vector<512x96xf32>
    %c0_3 = arith.constant 0 : index
    %c0_4 = arith.constant 0 : index
    %5 = vector.load %arg3[%c0_3, %c0_4] : memref<1x96xf32, #tpu.memory_space<vmem>>, vector<1x96xf32>
    %6 = vector.broadcast %5 : vector<1x96xf32> to vector<512x96xf32>
    %7 = arith.addf %4, %6 : vector<512x96xf32>
    %c0_5 = arith.constant 0 : index
    %c0_6 = arith.constant 0 : index
    %8 = vector.load %arg4[%c0_5, %c0_6] : memref<512x96xf32, #tpu.memory_space<vmem>>, vector<512x96xf32>
    tpu.vector_store %arg4[%c0_5, %c0_6], %7 {strides = array<i32>} : memref<512x96xf32, #tpu.memory_space<vmem>>, vector<512x96xf32>,
    return
  }
  func.func @transform_0(%arg0: i32) -> (i32, i32) {
    %c0_i32 = arith.constant 0 : i32
    %c0_i32_0 = arith.constant 0 : i32
    return %arg0, %c0_i32 : i32, i32
  }
  func.func @transform_1(%arg0: i32) -> (i32, i32) {
    %c0_i32 = arith.constant 0 : i32
    %c0_i32_0 = arith.constant 0 : i32
    %c0_i32_1 = arith.constant 0 : i32
    return %c0_i32, %c0_i32_0 : i32, i32
  }
  func.func @transform_2(%arg0: i32) -> (i32, i32) {
    %c0_i32 = arith.constant 0 : i32
    %c0_i32_0 = arith.constant 0 : i32
    %c0_i32_1 = arith.constant 0 : i32
    return %c0_i32, %c0_i32_0 : i32, i32
  }
  func.func @transform_3(%arg0: i32) -> (i32, i32) {
    %c0_i32 = arith.constant 0 : i32
    %c0_i32_0 = arith.constant 0 : i32
    return %arg0, %c0_i32 : i32, i32
  }
}

</mosaic_0001>

<llo_original>
// kernel: tpu_custom_call.1
$region0: #{tpu_custom_call.1}
  #allocation0 [shape = 'u32[]', space=smem, size = 0x4, offset = 0x4, fixed_abs, tag = 'smem constant byte address 0x4 - core index']
  #allocation1 [shape = 'u32[144,128]{1,0:T(1,128)}', space=vmem, size = 0x12000, scoped, tag = 'internal scratch']
  %s0 = inlined_call_operand.vmem [shape: f32[512,32], index: 0, kind: input, shape index: {}]
  %s1 = inlined_call_operand.vmem [shape: f32[32,96], index: 1, kind: input, shape index: {}]
  %s2 = inlined_call_operand.vmem [shape: f32[1,96], index: 2, kind: input, shape index: {}]
  %s3 = inlined_call_operand.vmem [shape: f32[512,96], index: 3, kind: output, shape index: {}]
  %s4 = sld [smem:[#allocation0]]
  $region22: #{tpu_custom_call.1} parent=0
    _
  %s6 = ssub.s32 1, %s4
  %s7 = scalar_select 0, %s6, %s4
  // Predicated region
  $region2: #{tpu_custom_call.1} parent=0 // pred_check
    _
  $region3: #{tpu_custom_call.1} parent=0 // pred_check_branch
    %9 = sbr.rel (0) target = $region5
  $region4: #{tpu_custom_call.1} parent=0 // pred_region
    _
  $region5: #{tpu_custom_call.1} parent=0 // pred_fallthru
    _
  // Predicated region
  $region6: #{tpu_custom_call.1} parent=0 // pred_check
    _
  $region7: #{tpu_custom_call.1} parent=0 // pred_check_branch
    %11 = sbr.rel (0) target = $region9
  $region8: #{tpu_custom_call.1} parent=0 // pred_region
    _
  $region9: #{tpu_custom_call.1} parent=0 // pred_fallthru
    _
  // Predicated region
  $region10: #{tpu_custom_call.1} parent=0 // pred_check
    _
  $region11: #{tpu_custom_call.1} parent=0 // pred_check_branch
    %13 = sbr.rel (0) target = $region13
  $region12: #{tpu_custom_call.1} parent=0 // pred_region
    _
  $region13: #{tpu_custom_call.1} parent=0 // pred_fallthru
    _
  %v15 = vld [vmem:[%s0] sm:$0xff]
  %v16 = vld [vmem:[%s0 + $0x8] sm:$0xff]
  %v17 = vld [vmem:[%s0 + $0x10] sm:$0xff]
  %v18 = vld [vmem:[%s0 + $0x18] sm:$0xff]
  %v19 = vld [vmem:[%s0 + $0x20] sm:$0xff]
  %v20 = vld [vmem:[%s0 + $0x28] sm:$0xff]
  %v21 = vld [vmem:[%s0 + $0x30] sm:$0xff]
  %v22 = vld [vmem:[%s0 + $0x38] sm:$0xff]
  %v23 = vld [vmem:[%s0 + $0x40] sm:$0xff]
  %v24 = vld [vmem:[%s0 + $0x48] sm:$0xff]
  %v25 = vld [vmem:[%s0 + $0x50] sm:$0xff]
  %v26 = vld [vmem:[%s0 + $0x58] sm:$0xff]
  %v27 = vld [vmem:[%s0 + $0x60] sm:$0xff]
  %v28 = vld [vmem:[%s0 + $0x68] sm:$0xff]
  %v29 = vld [vmem:[%s0 + $0x70] sm:$0xff]
  %v30 = vld [vmem:[%s0 + $0x78] sm:$0xff]
  %v31 = vld [vmem:[%s0 + $0x80] sm:$0xff]
  %v32 = vld [vmem:[%s0 + $0x88] sm:$0xff]
  %v33 = vld [vmem:[%s0 + $0x90] sm:$0xff]
  %v34 = vld [vmem:[%s0 + $0x98] sm:$0xff]
  %v35 = vld [vmem:[%s0 + $0xa0] sm:$0xff]
  %v36 = vld [vmem:[%s0 + $0xa8] sm:$0xff]
  %v37 = vld [vmem:[%s0 + $0xb0] sm:$0xff]
  %v38 = vld [vmem:[%s0 + $0xb8] sm:$0xff]
  %v39 = vld [vmem:[%s0 + $0xc0] sm:$0xff]
  %v40 = vld [vmem:[%s0 + $0xc8] sm:$0xff]
  %v41 = vld [vmem:[%s0 + $0xd0] sm:$0xff]
  %v42 = vld [vmem:[%s0 + $0xd8] sm:$0xff]
  %v43 = vld [vmem:[%s0 + $0xe0] sm:$0xff]
  %v44 = vld [vmem:[%s0 + $0xe8] sm:$0xff]
  %v45 = vld [vmem:[%s0 + $0xf0] sm:$0xff]
  %v46 = vld [vmem:[%s0 + $0xf8] sm:$0xff]
  %v47 = vld [vmem:[%s0 + $0x100] sm:$0xff]
  %v48 = vld [vmem:[%s0 + $0x108] sm:$0xff]
  %v49 = vld [vmem:[%s0 + $0x110] sm:$0xff]
  %v50 = vld [vmem:[%s0 + $0x118] sm:$0xff]
  %v51 = vld [vmem:[%s0 + $0x120] sm:$0xff]
  %v52 = vld [vmem:[%s0 + $0x128] sm:$0xff]
  %v53 = vld [vmem:[%s0 + $0x130] sm:$0xff]
  %v54 = vld [vmem:[%s0 + $0x138] sm:$0xff]
  %v55 = vld [vmem:[%s0 + $0x140] sm:$0xff]
  %v56 = vld [vmem:[%s0 + $0x148] sm:$0xff]
  %v57 = vld [vmem:[%s0 + $0x150] sm:$0xff]
  %v58 = vld [vmem:[%s0 + $0x158] sm:$0xff]
  %v59 = vld [vmem:[%s0 + $0x160] sm:$0xff]
  %v60 = vld [vmem:[%s0 + $0x168] sm:$0xff]
  %v61 = vld [vmem:[%s0 + $0x170] sm:$0xff]
  %v62 = vld [vmem:[%s0 + $0x178] sm:$0xff]
  %v63 = vld [vmem:[%s0 + $0x180] sm:$0xff]
  %v64 = vld [vmem:[%s0 + $0x188] sm:$0xff]
  %v65 = vld [vmem:[%s0 + $0x190] sm:$0xff]
  %v66 = vld [vmem:[%s0 + $0x198] sm:$0xff]
  %v67 = vld [vmem:[%s0 + $0x1a0] sm:$0xff]
  %v68 = vld [vmem:[%s0 + $0x1a8] sm:$0xff]
  %v69 = vld [vmem:[%s0 + $0x1b0] sm:$0xff]
  %v70 = vld [vmem:[%s0 + $0x1b8] sm:$0xff]
  %v71 = vld [vmem:[%s0 + $0x1c0] sm:$0xff]
  %v72 = vld [vmem:[%s0 + $0x1c8] sm:$0xff]
  %v73 = vld [vmem:[%s0 + $0x1d0] sm:$0xff]
  %v74 = vld [vmem:[%s0 + $0x1d8] sm:$0xff]
  %v75 = vld [vmem:[%s0 + $0x1e0] sm:$0xff]
  %v76 = vld [vmem:[%s0 + $0x1e8] sm:$0xff]
  %v77 = vld [vmem:[%s0 + $0x1f0] sm:$0xff]
  %v78 = vld [vmem:[%s0 + $0x1f8] sm:$0xff]
  %v79 = vpack.c.bf16 %v16, %v15
  %v80 = vpack.c.bf16 %v18, %v17
  %v81 = vpack.c.bf16 %v20, %v19
  %v82 = vpack.c.bf16 %v22, %v21
  %v83 = vpack.c.bf16 %v24, %v23
  %v84 = vpack.c.bf16 %v26, %v25
  %v85 = vpack.c.bf16 %v28, %v27
  %v86 = vpack.c.bf16 %v30, %v29
  %v87 = vpack.c.bf16 %v32, %v31
  %v88 = vpack.c.bf16 %v34, %v33
  %v89 = vpack.c.bf16 %v36, %v35
  %v90 = vpack.c.bf16 %v38, %v37
  %v91 = vpack.c.bf16 %v40, %v39
  %v92 = vpack.c.bf16 %v42, %v41
  %v93 = vpack.c.bf16 %v44, %v43
  %v94 = vpack.c.bf16 %v46, %v45
  %v95 = vpack.c.bf16 %v48, %v47
  %v96 = vpack.c.bf16 %v50, %v49
  %v97 = vpack.c.bf16 %v52, %v51
  %v98 = vpack.c.bf16 %v54, %v53
  %v99 = vpack.c.bf16 %v56, %v55
  %v100 = vpack.c.bf16 %v58, %v57
  %v101 = vpack.c.bf16 %v60, %v59
  %v102 = vpack.c.bf16 %v62, %v61
  %v103 = vpack.c.bf16 %v64, %v63
  %v104 = vpack.c.bf16 %v66, %v65
  %v105 = vpack.c.bf16 %v68, %v67
  %v106 = vpack.c.bf16 %v70, %v69
  %v107 = vpack.c.bf16 %v72, %v71
  %v108 = vpack.c.bf16 %v74, %v73
  %v109 = vpack.c.bf16 %v76, %v75
  %v110 = vpack.c.bf16 %v78, %v77
  %v111 = vld [vmem:[%s1] sm:$0xff]
  %v112 = vld [vmem:[%s1 + $0x8] sm:$0xff]
  %v113 = vld [vmem:[%s1 + $0x10] sm:$0xff]
  %v114 = vld [vmem:[%s1 + $0x18] sm:$0xff]
  %v115 = vpack.c.bf16 %v112, %v111
  %v116 = vpack.c.bf16 %v114, %v113
  %v117 = vld [vmem:[%s2] sm:$0x1]
  %v119 = vlaneseq
  %v120 = vshrl.u32 %v119, 7
  %v121 = vsub.s32 0, %v120
  %v122 = vrot.slane %v117, %v121
  %vm124 = vcmask 261120
  %v126 = vsel %vm124, %v79, 0
  %v129 = vsel %vm124, %v80, 0
  %v132 = vsel %vm124, %v81, 0
  %v135 = vsel %vm124, %v82, 0
  %v138 = vsel %vm124, %v83, 0
  %v141 = vsel %vm124, %v84, 0
  %v144 = vsel %vm124, %v85, 0
  %v147 = vsel %vm124, %v86, 0
  %v150 = vsel %vm124, %v87, 0
  %v153 = vsel %vm124, %v88, 0
  %v156 = vsel %vm124, %v89, 0
  %v159 = vsel %vm124, %v90, 0
  %v162 = vsel %vm124, %v91, 0
  %v165 = vsel %vm124, %v92, 0
  %v168 = vsel %vm124, %v93, 0
  %v171 = vsel %vm124, %v94, 0
  %v174 = vsel %vm124, %v95, 0
  %v177 = vsel %vm124, %v96, 0
  %v180 = vsel %vm124, %v97, 0
  %v183 = vsel %vm124, %v98, 0
  %v186 = vsel %vm124, %v99, 0
  %v189 = vsel %vm124, %v100, 0
  %v192 = vsel %vm124, %v101, 0
  %v195 = vsel %vm124, %v102, 0
  %v198 = vsel %vm124, %v103, 0
  %v201 = vsel %vm124, %v104, 0
  %v204 = vsel %vm124, %v105, 0
  %v207 = vsel %vm124, %v106, 0
  %v210 = vsel %vm124, %v107, 0
  %v213 = vsel %vm124, %v108, 0
  %v216 = vsel %vm124, %v109, 0
  %v219 = vsel %vm124, %v110, 0
  %221 = vmatprep.subr.bf16.mxu0 0
  %222 = vmatpush1.bf16.msra.mxu0 0
  %223 = vmatprep.subr.bf16.mxu0 0
  %224 = vmatpush1.bf16.msra.mxu0 0
  %225 = vmatprep.subr.bf16.mxu0 0
  %226 = vmatpush1.bf16.msra.mxu0 0
  %227 = vmatprep.subr.bf16.mxu0 0
  %228 = vmatpush1.bf16.msra.mxu0 0
  %229 = vmatprep.subr.bf16.mxu0 0
  %230 = vmatpush1.bf16.msra.mxu0 0
  %231 = vmatprep.subr.bf16.mxu0 0
  %232 = vmatpush1.bf16.msra.mxu0 0
  %233 = vmatprep.subr.bf16.mxu0 0
  %234 = vmatpush1.bf16.msra.mxu0 %v116
  %235 = vmatprep.subr.bf16.mxu0 0
  %236 = vmatpush1.bf16.msra.mxu0 %v115
  %237 = vmatprep.subr.bf16.mxu0 0
  %238 = vmatpush2.bf16.msra.mxu0 0
  %239 = vmatprep.subr.bf16.mxu0 0
  %240 = vmatpush2.bf16.msra.mxu0 0
  %241 = vmatprep.subr.bf16.mxu0 0
  %242 = vmatpush2.bf16.msra.mxu0 0
  %243 = vmatprep.subr.bf16.mxu0 0
  %244 = vmatpush2.bf16.msra.mxu0 0
  %245 = vmatprep.subr.bf16.mxu0 0
  %246 = vmatpush2.bf16.msra.mxu0 0
  %247 = vmatprep.subr.bf16.mxu0 0
  %248 = vmatpush2.bf16.msra.mxu0 0
  %249 = vmatprep.subr.bf16.mxu0 0
  %250 = vmatpush2.bf16.msra.mxu0 0
  %251 = vmatprep.subr.bf16.mxu0 0
  %252 = vmatpush2.bf16.msra.mxu0 0
  %253 = vmatprep.mubr.bf16.mxu0 0
  %254 = vmatmul.mubr.bf16.gmra.mxu0 %v126
  %v255 = vpop.f32.mrf.mxu0
  %v256 = vadd.f32 %v122, %v255
  %v257 = vpop.f32.mrf.mxu0
  %v258 = vpop.f32.mrf.mxu0
  %v259 = vadd.f32 %v122, %v258
  %v260 = vpop.f32.mrf.mxu0
  %261 = vmatprep.mubr.bf16.mxu0 0
  %262 = vmatmul.mubr.bf16.gmra.mxu0 %v129
  %v263 = vpop.f32.mrf.mxu0
  %v264 = vadd.f32 %v122, %v263
  %v265 = vpop.f32.mrf.mxu0
  %v266 = vpop.f32.mrf.mxu0
  %v267 = vadd.f32 %v122, %v266
  %v268 = vpop.f32.mrf.mxu0
  %269 = vmatprep.mubr.bf16.mxu0 0
  %270 = vmatmul.mubr.bf16.gmra.mxu0 %v132
  %v271 = vpop.f32.mrf.mxu0
  %v272 = vadd.f32 %v122, %v271
  %v273 = vpop.f32.mrf.mxu0
  %v274 = vpop.f32.mrf.mxu0
  %v275 = vadd.f32 %v122, %v274
  %v276 = vpop.f32.mrf.mxu0
  %277 = vmatprep.mubr.bf16.mxu0 0
  %278 = vmatmul.mubr.bf16.gmra.mxu0 %v135
  %v279 = vpop.f32.mrf.mxu0
  %v280 = vadd.f32 %v122, %v279
  %v281 = vpop.f32.mrf.mxu0
  %v282 = vpop.f32.mrf.mxu0
  %v283 = vadd.f32 %v122, %v282
  %v284 = vpop.f32.mrf.mxu0
  %285 = vmatprep.mubr.bf16.mxu0 0
  %286 = vmatmul.mubr.bf16.gmra.mxu0 %v138
  %v287 = vpop.f32.mrf.mxu0
  %v288 = vadd.f32 %v122, %v287
  %v289 = vpop.f32.mrf.mxu0
  %v290 = vpop.f32.mrf.mxu0
  %v291 = vadd.f32 %v122, %v290
  %v292 = vpop.f32.mrf.mxu0
  %293 = vmatprep.mubr.bf16.mxu0 0
  %294 = vmatmul.mubr.bf16.gmra.mxu0 %v141
  %v295 = vpop.f32.mrf.mxu0
  %v296 = vadd.f32 %v122, %v295
  %v297 = vpop.f32.mrf.mxu0
  %v298 = vpop.f32.mrf.mxu0
  %v299 = vadd.f32 %v122, %v298
  %v300 = vpop.f32.mrf.mxu0
  %301 = vmatprep.mubr.bf16.mxu0 0
  %302 = vmatmul.mubr.bf16.gmra.mxu0 %v144
  %v303 = vpop.f32.mrf.mxu0
  %v304 = vadd.f32 %v122, %v303
  %v305 = vpop.f32.mrf.mxu0
  %v306 = vpop.f32.mrf.mxu0
  %v307 = vadd.f32 %v122, %v306
  %v308 = vpop.f32.mrf.mxu0
  %309 = vmatprep.mubr.bf16.mxu0 0
  %310 = vmatmul.mubr.bf16.gmra.mxu0 %v147
  %v311 = vpop.f32.mrf.mxu0
  %v312 = vadd.f32 %v122, %v311
  %v313 = vpop.f32.mrf.mxu0
  %v314 = vpop.f32.mrf.mxu0
  %v315 = vadd.f32 %v122, %v314
  %v316 = vpop.f32.mrf.mxu0
  %317 = vmatprep.mubr.bf16.mxu0 0
  %318 = vmatmul.mubr.bf16.gmra.mxu0 %v150
  %v319 = vpop.f32.mrf.mxu0
  %v320 = vadd.f32 %v122, %v319
  %v321 = vpop.f32.mrf.mxu0
  %v322 = vpop.f32.mrf.mxu0
  %v323 = vadd.f32 %v122, %v322
  %v324 = vpop.f32.mrf.mxu0
  %325 = vmatprep.mubr.bf16.mxu0 0
  %326 = vmatmul.mubr.bf16.gmra.mxu0 %v153
  %v327 = vpop.f32.mrf.mxu0
  %v328 = vadd.f32 %v122, %v327
  %v329 = vpop.f32.mrf.mxu0
  %v330 = vpop.f32.mrf.mxu0
  %v331 = vadd.f32 %v122, %v330
  %v332 = vpop.f32.mrf.mxu0
  %333 = vmatprep.mubr.bf16.mxu0 0
  %334 = vmatmul.mubr.bf16.gmra.mxu0 %v156
  %v335 = vpop.f32.mrf.mxu0
  %v336 = vadd.f32 %v122, %v335
  %v337 = vpop.f32.mrf.mxu0
  %v338 = vpop.f32.mrf.mxu0
  %v339 = vadd.f32 %v122, %v338
  %v340 = vpop.f32.mrf.mxu0
  %341 = vmatprep.mubr.bf16.mxu0 0
  %342 = vmatmul.mubr.bf16.gmra.mxu0 %v159
  %v343 = vpop.f32.mrf.mxu0
  %v344 = vadd.f32 %v122, %v343
  %v345 = vpop.f32.mrf.mxu0
  %v346 = vpop.f32.mrf.mxu0
  %v347 = vadd.f32 %v122, %v346
  %v348 = vpop.f32.mrf.mxu0
  %349 = vmatprep.mubr.bf16.mxu0 0
  %350 = vmatmul.mubr.bf16.gmra.mxu0 %v162
  %v351 = vpop.f32.mrf.mxu0
  %v352 = vadd.f32 %v122, %v351
  %v353 = vpop.f32.mrf.mxu0
  %v354 = vpop.f32.mrf.mxu0
  %v355 = vadd.f32 %v122, %v354
  %v356 = vpop.f32.mrf.mxu0
  %357 = vmatprep.mubr.bf16.mxu0 0
  %358 = vmatmul.mubr.bf16.gmra.mxu0 %v165
  %v359 = vpop.f32.mrf.mxu0
  %v360 = vadd.f32 %v122, %v359
  %v361 = vpop.f32.mrf.mxu0
  %v362 = vpop.f32.mrf.mxu0
  %v363 = vadd.f32 %v122, %v362
  %v364 = vpop.f32.mrf.mxu0
  %365 = vmatprep.mubr.bf16.mxu0 0
  %366 = vmatmul.mubr.bf16.gmra.mxu0 %v168
  %v367 = vpop.f32.mrf.mxu0
  %v368 = vadd.f32 %v122, %v367
  %v369 = vpop.f32.mrf.mxu0
  %v370 = vpop.f32.mrf.mxu0
  %v371 = vadd.f32 %v122, %v370
  %v372 = vpop.f32.mrf.mxu0
  %373 = vmatprep.mubr.bf16.mxu0 0
  %374 = vmatmul.mubr.bf16.gmra.mxu0 %v171
  %v375 = vpop.f32.mrf.mxu0
  %v376 = vadd.f32 %v122, %v375
  %v377 = vpop.f32.mrf.mxu0
  %v378 = vpop.f32.mrf.mxu0
  %v379 = vadd.f32 %v122, %v378
  %v380 = vpop.f32.mrf.mxu0
  %381 = vmatprep.mubr.bf16.mxu0 0
  %382 = vmatmul.mubr.bf16.gmra.mxu0 %v174
  %v383 = vpop.f32.mrf.mxu0
  %v384 = vadd.f32 %v122, %v383
  %v385 = vpop.f32.mrf.mxu0
  %v386 = vpop.f32.mrf.mxu0
  %v387 = vadd.f32 %v122, %v386
  %v388 = vpop.f32.mrf.mxu0
  %389 = vmatprep.mubr.bf16.mxu0 0
  %390 = vmatmul.mubr.bf16.gmra.mxu0 %v177
  %v391 = vpop.f32.mrf.mxu0
  %v392 = vadd.f32 %v122, %v391
  %v393 = vpop.f32.mrf.mxu0
  %v394 = vpop.f32.mrf.mxu0
  %v395 = vadd.f32 %v122, %v394
  %v396 = vpop.f32.mrf.mxu0
  %397 = vmatprep.mubr.bf16.mxu0 0
  %398 = vmatmul.mubr.bf16.gmra.mxu0 %v180
  %v399 = vpop.f32.mrf.mxu0
  %v400 = vadd.f32 %v122, %v399
  %v401 = vpop.f32.mrf.mxu0
  %v402 = vpop.f32.mrf.mxu0
  %v403 = vadd.f32 %v122, %v402
  %v404 = vpop.f32.mrf.mxu0
  %405 = vmatprep.mubr.bf16.mxu0 0
  %406 = vmatmul.mubr.bf16.gmra.mxu0 %v183
  %v407 = vpop.f32.mrf.mxu0
  %v408 = vadd.f32 %v122, %v407
  %v409 = vpop.f32.mrf.mxu0
  %v410 = vpop.f32.mrf.mxu0
  %v411 = vadd.f32 %v122, %v410
  %v412 = vpop.f32.mrf.mxu0
  %413 = vmatprep.mubr.bf16.mxu0 0
  %414 = vmatmul.mubr.bf16.gmra.mxu0 %v186
  %v415 = vpop.f32.mrf.mxu0
  %v416 = vadd.f32 %v122, %v415
  %v417 = vpop.f32.mrf.mxu0
  %v418 = vpop.f32.mrf.mxu0
  %v419 = vadd.f32 %v122, %v418
  %v420 = vpop.f32.mrf.mxu0
  %421 = vmatprep.mubr.bf16.mxu0 0
  %422 = vmatmul.mubr.bf16.gmra.mxu0 %v189
  %v423 = vpop.f32.mrf.mxu0
  %v424 = vadd.f32 %v122, %v423
  %v425 = vpop.f32.mrf.mxu0
  %v426 = vpop.f32.mrf.mxu0
  %v427 = vadd.f32 %v122, %v426
  %v428 = vpop.f32.mrf.mxu0
  %429 = vmatprep.mubr.bf16.mxu0 0
  %430 = vmatmul.mubr.bf16.gmra.mxu0 %v192
  %v431 = vpop.f32.mrf.mxu0
  %v432 = vadd.f32 %v122, %v431
  %v433 = vpop.f32.mrf.mxu0
  %v434 = vpop.f32.mrf.mxu0
  %v435 = vadd.f32 %v122, %v434
  %v436 = vpop.f32.mrf.mxu0
  %437 = vmatprep.mubr.bf16.mxu0 0
  %438 = vmatmul.mubr.bf16.gmra.mxu0 %v195
  %v439 = vpop.f32.mrf.mxu0
  %v440 = vadd.f32 %v122, %v439
  %v441 = vpop.f32.mrf.mxu0
  %v442 = vpop.f32.mrf.mxu0
  %v443 = vadd.f32 %v122, %v442
  %v444 = vpop.f32.mrf.mxu0
  %445 = vmatprep.mubr.bf16.mxu0 0
  %446 = vmatmul.mubr.bf16.gmra.mxu0 %v198
  %v447 = vpop.f32.mrf.mxu0
  %v448 = vadd.f32 %v122, %v447
  %v449 = vpop.f32.mrf.mxu0
  %v450 = vpop.f32.mrf.mxu0
  %v451 = vadd.f32 %v122, %v450
  %v452 = vpop.f32.mrf.mxu0
  %453 = vmatprep.mubr.bf16.mxu0 0
  %454 = vmatmul.mubr.bf16.gmra.mxu0 %v201
  %v455 = vpop.f32.mrf.mxu0
  %v456 = vadd.f32 %v122, %v455
  %v457 = vpop.f32.mrf.mxu0
  %v458 = vpop.f32.mrf.mxu0
  %v459 = vadd.f32 %v122, %v458
  %v460 = vpop.f32.mrf.mxu0
  %461 = vmatprep.mubr.bf16.mxu0 0
  %462 = vmatmul.mubr.bf16.gmra.mxu0 %v204
  %v463 = vpop.f32.mrf.mxu0
  %v464 = vadd.f32 %v122, %v463
  %v465 = vpop.f32.mrf.mxu0
  %v466 = vpop.f32.mrf.mxu0
  %v467 = vadd.f32 %v122, %v466
  %v468 = vpop.f32.mrf.mxu0
  %469 = vmatprep.mubr.bf16.mxu0 0
  %470 = vmatmul.mubr.bf16.gmra.mxu0 %v207
  %v471 = vpop.f32.mrf.mxu0
  %v472 = vadd.f32 %v122, %v471
  %v473 = vpop.f32.mrf.mxu0
  %v474 = vpop.f32.mrf.mxu0
  %v475 = vadd.f32 %v122, %v474
  %v476 = vpop.f32.mrf.mxu0
  %477 = vmatprep.mubr.bf16.mxu0 0
  %478 = vmatmul.mubr.bf16.gmra.mxu0 %v210
  %v479 = vpop.f32.mrf.mxu0
  %v480 = vadd.f32 %v122, %v479
  %v481 = vpop.f32.mrf.mxu0
  %v482 = vpop.f32.mrf.mxu0
  %v483 = vadd.f32 %v122, %v482
  %v484 = vpop.f32.mrf.mxu0
  %485 = vmatprep.mubr.bf16.mxu0 0
  %486 = vmatmul.mubr.bf16.gmra.mxu0 %v213
  %v487 = vpop.f32.mrf.mxu0
  %v488 = vadd.f32 %v122, %v487
  %v489 = vpop.f32.mrf.mxu0
  %v490 = vpop.f32.mrf.mxu0
  %v491 = vadd.f32 %v122, %v490
  %v492 = vpop.f32.mrf.mxu0
  %493 = vmatprep.mubr.bf16.mxu0 0
  %494 = vmatmul.mubr.bf16.gmra.mxu0 %v216
  %v495 = vpop.f32.mrf.mxu0
  %v496 = vadd.f32 %v122, %v495
  %v497 = vpop.f32.mrf.mxu0
  %v498 = vpop.f32.mrf.mxu0
  %v499 = vadd.f32 %v122, %v498
  %v500 = vpop.f32.mrf.mxu0
  %501 = vmatprep.mubr.bf16.mxu0 0
  %502 = vmatmul.mubr.bf16.gmra.mxu0 %v219
  %v503 = vpop.f32.mrf.mxu0
  %v504 = vadd.f32 %v122, %v503
  %v505 = vpop.f32.mrf.mxu0
  %v506 = vpop.f32.mrf.mxu0
  %v507 = vadd.f32 %v122, %v506
  %v508 = vpop.f32.mrf.mxu0
  %509 = vdwg.mxu0
  %vm510 = vcmask 785408
  %511 = vst.msk [vmem:[%s3] sm:$0xff] %vm510, %v256
  %512 = vst.msk [vmem:[%s3 + $0x8] sm:$0xff] %vm510, %v259
  %513 = vst.msk [vmem:[%s3 + $0x10] sm:$0xff] %vm510, %v264
  %514 = vst.msk [vmem:[%s3 + $0x18] sm:$0xff] %vm510, %v267
  %515 = vst.msk [vmem:[%s3 + $0x20] sm:$0xff] %vm510, %v272
  %516 = vst.msk [vmem:[%s3 + $0x28] sm:$0xff] %vm510, %v275
  %517 = vst.msk [vmem:[%s3 + $0x30] sm:$0xff] %vm510, %v280
  %518 = vst.msk [vmem:[%s3 + $0x38] sm:$0xff] %vm510, %v283
  %519 = vst.msk [vmem:[%s3 + $0x40] sm:$0xff] %vm510, %v288
  %520 = vst.msk [vmem:[%s3 + $0x48] sm:$0xff] %vm510, %v291
  %521 = vst.msk [vmem:[%s3 + $0x50] sm:$0xff] %vm510, %v296
  %522 = vst.msk [vmem:[%s3 + $0x58] sm:$0xff] %vm510, %v299
  %523 = vst.msk [vmem:[%s3 + $0x60] sm:$0xff] %vm510, %v304
  %524 = vst.msk [vmem:[%s3 + $0x68] sm:$0xff] %vm510, %v307
  %525 = vst.msk [vmem:[%s3 + $0x70] sm:$0xff] %vm510, %v312
  %526 = vst.msk [vmem:[%s3 + $0x78] sm:$0xff] %vm510, %v315
  %527 = vst.msk [vmem:[%s3 + $0x80] sm:$0xff] %vm510, %v320
  %528 = vst.msk [vmem:[%s3 + $0x88] sm:$0xff] %vm510, %v323
  %529 = vst.msk [vmem:[%s3 + $0x90] sm:$0xff] %vm510, %v328
  %530 = vst.msk [vmem:[%s3 + $0x98] sm:$0xff] %vm510, %v331
  %531 = vst.msk [vmem:[%s3 + $0xa0] sm:$0xff] %vm510, %v336
  %532 = vst.msk [vmem:[%s3 + $0xa8] sm:$0xff] %vm510, %v339
  %533 = vst.msk [vmem:[%s3 + $0xb0] sm:$0xff] %vm510, %v344
  %534 = vst.msk [vmem:[%s3 + $0xb8] sm:$0xff] %vm510, %v347
  %535 = vst.msk [vmem:[%s3 + $0xc0] sm:$0xff] %vm510, %v352
  %536 = vst.msk [vmem:[%s3 + $0xc8] sm:$0xff] %vm510, %v355
  %537 = vst.msk [vmem:[%s3 + $0xd0] sm:$0xff] %vm510, %v360
  %538 = vst.msk [vmem:[%s3 + $0xd8] sm:$0xff] %vm510, %v363
  %539 = vst.msk [vmem:[%s3 + $0xe0] sm:$0xff] %vm510, %v368
  %540 = vst.msk [vmem:[%s3 + $0xe8] sm:$0xff] %vm510, %v371
  %541 = vst.msk [vmem:[%s3 + $0xf0] sm:$0xff] %vm510, %v376
  %542 = vst.msk [vmem:[%s3 + $0xf8] sm:$0xff] %vm510, %v379
  %543 = vst.msk [vmem:[%s3 + $0x100] sm:$0xff] %vm510, %v384
  %544 = vst.msk [vmem:[%s3 + $0x108] sm:$0xff] %vm510, %v387
  %545 = vst.msk [vmem:[%s3 + $0x110] sm:$0xff] %vm510, %v392
  %546 = vst.msk [vmem:[%s3 + $0x118] sm:$0xff] %vm510, %v395
  %547 = vst.msk [vmem:[%s3 + $0x120] sm:$0xff] %vm510, %v400
  %548 = vst.msk [vmem:[%s3 + $0x128] sm:$0xff] %vm510, %v403
  %549 = vst.msk [vmem:[%s3 + $0x130] sm:$0xff] %vm510, %v408
  %550 = vst.msk [vmem:[%s3 + $0x138] sm:$0xff] %vm510, %v411
  %551 = vst.msk [vmem:[%s3 + $0x140] sm:$0xff] %vm510, %v416
  %552 = vst.msk [vmem:[%s3 + $0x148] sm:$0xff] %vm510, %v419
  %553 = vst.msk [vmem:[%s3 + $0x150] sm:$0xff] %vm510, %v424
  %554 = vst.msk [vmem:[%s3 + $0x158] sm:$0xff] %vm510, %v427
  %555 = vst.msk [vmem:[%s3 + $0x160] sm:$0xff] %vm510, %v432
  %556 = vst.msk [vmem:[%s3 + $0x168] sm:$0xff] %vm510, %v435
  %557 = vst.msk [vmem:[%s3 + $0x170] sm:$0xff] %vm510, %v440
  %558 = vst.msk [vmem:[%s3 + $0x178] sm:$0xff] %vm510, %v443
  %559 = vst.msk [vmem:[%s3 + $0x180] sm:$0xff] %vm510, %v448
  %560 = vst.msk [vmem:[%s3 + $0x188] sm:$0xff] %vm510, %v451
  %561 = vst.msk [vmem:[%s3 + $0x190] sm:$0xff] %vm510, %v456
  %562 = vst.msk [vmem:[%s3 + $0x198] sm:$0xff] %vm510, %v459
  %563 = vst.msk [vmem:[%s3 + $0x1a0] sm:$0xff] %vm510, %v464
  %564 = vst.msk [vmem:[%s3 + $0x1a8] sm:$0xff] %vm510, %v467
  %565 = vst.msk [vmem:[%s3 + $0x1b0] sm:$0xff] %vm510, %v472
  %566 = vst.msk [vmem:[%s3 + $0x1b8] sm:$0xff] %vm510, %v475
  %567 = vst.msk [vmem:[%s3 + $0x1c0] sm:$0xff] %vm510, %v480
  %568 = vst.msk [vmem:[%s3 + $0x1c8] sm:$0xff] %vm510, %v483
  %569 = vst.msk [vmem:[%s3 + $0x1d0] sm:$0xff] %vm510, %v488
  %570 = vst.msk [vmem:[%s3 + $0x1d8] sm:$0xff] %vm510, %v491
  %571 = vst.msk [vmem:[%s3 + $0x1e0] sm:$0xff] %vm510, %v496
  %572 = vst.msk [vmem:[%s3 + $0x1e8] sm:$0xff] %vm510, %v499
  %573 = vst.msk [vmem:[%s3 + $0x1f0] sm:$0xff] %vm510, %v504
  %574 = vst.msk [vmem:[%s3 + $0x1f8] sm:$0xff] %vm510, %v507
  // Predicated region
  $region14: #{tpu_custom_call.1} parent=0 // pred_check
    _
  $region15: #{tpu_custom_call.1} parent=0 // pred_check_branch
    %576 = sbr.rel (0) target = $region17
  $region16: #{tpu_custom_call.1} parent=0 // pred_region
    _
  $region17: #{tpu_custom_call.1} parent=0 // pred_fallthru
    _
  // Predicated region
  $region18: #{tpu_custom_call.1} parent=0 // pred_check
    _
  $region19: #{tpu_custom_call.1} parent=0 // pred_check_branch
    %578 = sbr.rel (0) target = $region21
  $region20: #{tpu_custom_call.1} parent=0 // pred_region
    _
  $region21: #{tpu_custom_call.1} parent=0 // pred_fallthru
    _

</llo_original>
